<compile_context>
chip_gen: v5e
topology: v5e:2x2
jax: 0.10.0
libtpu: 0.0.40
codegen_flags: <defaults>
</compile_context>

<pallas_src>
import math

import jax
import jax.numpy as jnp
from jax.experimental import pallas as pl
from jax.experimental.pallas import tpu as pltpu


def make_positional_encoding(d_model: int, max_len: int = 5000) -> jax.Array:
    """PyTorch `pe` buffer: [max_len, d_model]; sin on even cols, cos on odd."""
    position = jnp.arange(max_len, dtype=jnp.float32)[:, None]            # [L, 1]
    div_term = jnp.exp(
        jnp.arange(0, d_model, 2, dtype=jnp.float32)
        * (-math.log(10000.0) / d_model))                                 # [D/2]
    angles = position * div_term                                          # [L, D/2]
    pe = jnp.stack([jnp.sin(angles), jnp.cos(angles)], axis=-1)           # interleave
    return pe.reshape(max_len, d_model)


def _pos_enc_kernel(x_ref, pe_ref, o_ref):
    # x_ref / o_ref: [Bb, ts, D]; pe_ref: [ts, D] broadcast over the batch rows.
    o_ref[...] = (x_ref[...].astype(jnp.float32)
                  + pe_ref[...][None, :, :]).astype(o_ref.dtype)


def _round_up(n: int, m: int) -> int:
    return ((n + m - 1) // m) * m


@jax.jit
def positional_encoding_forward(x: jax.Array, pe: jax.Array) -> jax.Array:
    """Mirrors PositionalEncoding.forward: x + pe[None, :x.shape[1], :]."""
    B, S, D = x.shape
    assert pe.shape[1] == D and pe.shape[0] >= S
    out_dtype = x.dtype  # add in f32 in-kernel, store in the activation dtype

    # ---- layout plumbing: fold sequence rows into lanes when d_model < 128 ----
    k = 1
    if D < 128 and 128 % D == 0 and S % (128 // D) == 0:
        k = 128 // D
    if k > 1:
        x_in = x.reshape(B, S // k, k * D)                 # free reshape
        if pe.shape[0] % k == 0:
            pe_in = pe.reshape(pe.shape[0] // k, k * D)    # free reshape
        else:
            pe_in = pe[:S].reshape(S // k, k * D)          # tiny one-time copy
        S_eff, D_eff = S // k, k * D
    else:
        x_in, pe_in, S_eff, D_eff = x, pe, S, D

    # ---- tile sizing by byte budget (~2 MiB per block) ----
    TARGET_BLOCK_BYTES = 2 * 1024 * 1024
    row_bytes = D_eff * 4  # budget against the widest (f32) path
    rows_budget = max(8, (TARGET_BLOCK_BYTES // row_bytes) // 8 * 8)

    if S_eff <= rows_budget:
        # One sequence tile covering the whole (folded) sequence; make every
        # block equal its full array dims (always legal, no OOB anywhere).
        ts = S_eff
        seq_tiles = 1
        if S_eff % 8 != 0:
            pe_in = pe_in[:S_eff]          # block == full pe dims
    else:
        ts = rows_budget                   # multiple of 8 -> always legal
        seq_tiles = pl.cdiv(S_eff, ts)

    # Pack several batch rows per block when the sequence fits one tile, to
    # amortize per-grid-step overhead and lengthen DMAs.
    Bb = 1
    if seq_tiles == 1:
        block_bytes = max(1, ts * row_bytes)
        cand = min(B, max(1, TARGET_BLOCK_BYTES // block_bytes))
        for d in range(cand, 0, -1):
            if B % d == 0:
                Bb = d
                break
    batch_tiles = pl.cdiv(B, Bb)

    x_item = jnp.dtype(x_in.dtype).itemsize
    out_item = jnp.dtype(out_dtype).itemsize
    live_bytes = 2 * (Bb * ts * D_eff * (x_item + out_item) + ts * D_eff * 4)
    vmem_limit = int(min(64 * 1024 * 1024, max(32 * 1024 * 1024, 2 * live_bytes)))

    # ---- grid: sequence tiles outermost so pe's block index is constant
    # across all inner (batch) steps -> pe fetched once per sequence tile.
    if seq_tiles > 1:
        grid = (seq_tiles, batch_tiles)
        x_map = lambda s, b: (b, s, 0)
        pe_map = lambda s, b: (s, 0)
    else:
        grid = (batch_tiles,)
        x_map = lambda b: (b, 0, 0)
        pe_map = lambda b: (0, 0)

    out = pl.pallas_call(
        _pos_enc_kernel,
        out_shape=jax.ShapeDtypeStruct((B, S_eff, D_eff), out_dtype),
        grid_spec=pl.GridSpec(
            grid=grid,
            in_specs=[
                pl.BlockSpec((Bb, ts, D_eff), x_map),
                pl.BlockSpec((ts, D_eff), pe_map),
            ],
            out_specs=pl.BlockSpec((Bb, ts, D_eff), x_map),
        ),
        compiler_params=pltpu.CompilerParams(
            dimension_semantics=("parallel",) * len(grid),
            vmem_limit_bytes=vmem_limit),
    )(x_in, pe_in)

    return out.reshape(B, S, D) if k > 1 else out


if __name__ == "__main__":
    d_model = 32
    max_len = 5000
    B, S = 2, 8

    key = jax.random.PRNGKey(0)
    x = jax.random.normal(key, (B, S, d_model), jnp.float32)
    pe = make_positional_encoding(d_model, max_len)

    out = positional_encoding_forward(x, pe)
    jax.block_until_ready(out)

    # Pure-JAX reference of the PyTorch forward.
    ref = x + pe[None, :S, :]
    assert out.shape == (B, S, d_model)
    assert out.dtype == x.dtype
    assert jnp.allclose(out, ref, atol=1e-6, rtol=1e-6)
    print("KERNEL_OK")
</pallas_src>

<mosaic_0001>
module attributes {stable_mosaic.version = 11 : i64} {
  func.func @_pos_enc_kernel(%arg0: i32, %arg1: memref<2x2x128xf32, #tpu.memory_space<vmem>>, %arg2: memref<2x128xf32, #tpu.memory_space<vmem>>, %arg3: memref<2x2x128xf32, #tpu.memory_space<vmem>>) attributes {dimension_semantics = [#tpu.dimension_semantics<parallel>], iteration_bounds = array<i64: 1>, scalar_prefetch = 0 : i64, scratch_operands = 0 : i64, tpu.core_type = #tpu.core_type<tc>, window_params = [{transform_indices = @transform_0, window_bounds = array<i64: 2, 2, 128>}, {pipeline_mode = #tpu.pipeline_mode<synchronous>, transform_indices = @transform_1, window_bounds = array<i64: 2, 128>}, {transform_indices = @transform_2, window_bounds = array<i64: 2, 2, 128>}]} {
    %c0 = arith.constant 0 : index
    %c0_0 = arith.constant 0 : index
    %c0_1 = arith.constant 0 : index
    %0 = vector.load %arg1[%c0, %c0_0, %c0_1] : memref<2x2x128xf32, #tpu.memory_space<vmem>>, vector<2x2x128xf32>
    %c0_2 = arith.constant 0 : index
    %c0_3 = arith.constant 0 : index
    %1 = vector.load %arg2[%c0_2, %c0_3] : memref<2x128xf32, #tpu.memory_space<vmem>>, vector<2x128xf32>
    %2 = vector.shape_cast %1 : vector<2x128xf32> to vector<1x2x128xf32>
    %3 = vector.broadcast %2 : vector<1x2x128xf32> to vector<2x2x128xf32>
    %4 = arith.addf %0, %3 : vector<2x2x128xf32>
    %c0_4 = arith.constant 0 : index
    %c0_5 = arith.constant 0 : index
    %c0_6 = arith.constant 0 : index
    %5 = vector.load %arg3[%c0_4, %c0_5, %c0_6] : memref<2x2x128xf32, #tpu.memory_space<vmem>>, vector<2x2x128xf32>
    tpu.vector_store %arg3[%c0_4, %c0_5, %c0_6], %4 {strides = array<i32>} : memref<2x2x128xf32, #tpu.memory_space<vmem>>, vector<2x2x128xf32>,
    return
  }
  func.func @transform_0(%arg0: i32) -> (i32, i32, i32) {
    %c0_i32 = arith.constant 0 : i32
    %c0_i32_0 = arith.constant 0 : i32
    %c0_i32_1 = arith.constant 0 : i32
    return %arg0, %c0_i32, %c0_i32_0 : i32, i32, i32
  }
  func.func @transform_1(%arg0: i32) -> (i32, i32) {
    %c0_i32 = arith.constant 0 : i32
    %c0_i32_0 = arith.constant 0 : i32
    %c0_i32_1 = arith.constant 0 : i32
    return %c0_i32, %c0_i32_0 : i32, i32
  }
  func.func @transform_2(%arg0: i32) -> (i32, i32, i32) {
    %c0_i32 = arith.constant 0 : i32
    %c0_i32_0 = arith.constant 0 : i32
    %c0_i32_1 = arith.constant 0 : i32
    return %arg0, %c0_i32, %c0_i32_0 : i32, i32, i32
  }
}

</mosaic_0001>

<llo_original>
// kernel: positional_encoding_forward.1
$region0: #{positional_encoding_forward.1}
  #allocation0 [shape = 'u32[]', space=smem, size = 0x4, offset = 0x4, fixed_abs, tag = 'smem constant byte address 0x4 - core index']
  #allocation1 [shape = 'u32[72,128]{1,0:T(1,128)}', space=vmem, size = 0x9000, scoped, tag = 'internal scratch']
  %s0 = inlined_call_operand.vmem [shape: f32[2,2,128], index: 0, kind: input, shape index: {}]
  %s1 = inlined_call_operand.vmem [shape: f32[2,128], index: 1, kind: input, shape index: {}]
  %s2 = inlined_call_operand.vmem [shape: f32[2,2,128], index: 2, kind: output, shape index: {}]
  %s3 = sld [smem:[#allocation0]]
  $region18: #{positional_encoding_forward.1} parent=0
    _
  %s5 = ssub.s32 1, %s3
  %s6 = scalar_select 0, %s5, %s3
  // Predicated region
  $region2: #{positional_encoding_forward.1} parent=0 // pred_check
    _
  $region3: #{positional_encoding_forward.1} parent=0 // pred_check_branch
    %8 = sbr.rel (0) target = $region5
  $region4: #{positional_encoding_forward.1} parent=0 // pred_region
    _
  $region5: #{positional_encoding_forward.1} parent=0 // pred_fallthru
    _
  // Predicated region
  $region6: #{positional_encoding_forward.1} parent=0 // pred_check
    _
  $region7: #{positional_encoding_forward.1} parent=0 // pred_check_branch
    %10 = sbr.rel (0) target = $region9
  $region8: #{positional_encoding_forward.1} parent=0 // pred_region
    _
  $region9: #{positional_encoding_forward.1} parent=0 // pred_fallthru
    _
  %v11 = vld [vmem:[%s0] sm:$0x3]
  %v12 = vld [vmem:[%s0 + $0x2] sm:$0x3]
  %v13 = vld [vmem:[%s1] sm:$0x3]
  %v14 = vadd.f32 %v11, %v13
  %v15 = vadd.f32 %v12, %v13
  %16 = vst [vmem:[%s2] sm:$0x3] %v14
  %17 = vst [vmem:[%s2 + $0x2] sm:$0x3] %v15
  // Predicated region
  $region10: #{positional_encoding_forward.1} parent=0 // pred_check
    _
  $region11: #{positional_encoding_forward.1} parent=0 // pred_check_branch
    %19 = sbr.rel (0) target = $region13
  $region12: #{positional_encoding_forward.1} parent=0 // pred_region
    _
  $region13: #{positional_encoding_forward.1} parent=0 // pred_fallthru
    _
  // Predicated region
  $region14: #{positional_encoding_forward.1} parent=0 // pred_check
    _
  $region15: #{positional_encoding_forward.1} parent=0 // pred_check_branch
    %21 = sbr.rel (0) target = $region17
  $region16: #{positional_encoding_forward.1} parent=0 // pred_region
    _
  $region17: #{positional_encoding_forward.1} parent=0 // pred_fallthru
    _

</llo_original>
